<compile_context>
chip_gen: v6e
topology: v6e:2x2x1
jax: 0.10.0
libtpu: 0.0.40
codegen_flags: <defaults>
</compile_context>

<pallas_src>
import jax
import jax.numpy as jnp
from jax import lax
from jax.experimental import pallas as pl
from jax.experimental.pallas import tpu as pltpu


# --------------------------------------------------------------------------- #
# Kernel
# --------------------------------------------------------------------------- #
def _make_kernel(x1_full_k: bool, tk: int, swap_out: bool):
    """Kernel for one (batch-block, M-tile, N-tile, K-tile) grid step.

    x1_ref : (bb, K, tm) if x1_full_k else (bb, tk, tm)   slab of x1 (B, K, M)
    x2_ref : (bb, tn, tk)                                  slab of x2 (B, N, K)
    o_ref  : (bb, tn, tm) if swap_out else (bb, tm, tn)    output slab
    acc_ref: (bb, tn, tm) f32 accumulator (MXU-native orientation)
    """

    def kernel(x1_ref, x2_ref, o_ref, acc_ref):
        k = pl.program_id(3)

        @pl.when(k == 0)
        def _init():
            acc_ref[...] = jnp.zeros_like(acc_ref)

        if x1_full_k:
            # x1 stays resident in VMEM across the whole K axis: slice the
            # current K window (sublane-aligned since tk % 8 == 0).
            off = pl.multiple_of(k * tk, tk)
            x1_blk = x1_ref[:, pl.ds(off, tk), :]
        else:
            x1_blk = x1_ref[...]

        # MXU-native batched matmul: x2[b] (tn, tk) @ x1[b] (tk, tm) -> (tn, tm).
        # LHS contracts on its last dim, RHS on its first dim, so Mosaic needs
        # no operand transposes before the vmatmul push.  Default precision
        # (multi-pass bf16 on the MXU); pass precision=lax.Precision.HIGHEST
        # here if bit-accurate f32 is required (~3x MXU cost).
        acc_ref[...] += lax.dot_general(
            x2_ref[...],
            x1_blk,
            dimension_numbers=(((2,), (1,)), ((0,), (0,))),  # bnk,bkm->bnm
            preferred_element_type=jnp.float32,
        )

        @pl.when(k == pl.num_programs(3) - 1)
        def _finalize():
            if swap_out:
                # Lane-dense store in (tn, tm) orientation; the wrapper does
                # the final (0, 2, 1) permute outside the kernel.
                o_ref[...] = acc_ref[...].astype(o_ref.dtype)
            else:
                # Single transpose per output tile, amortized over all K steps.
                o_ref[...] = jnp.swapaxes(acc_ref[...], 1, 2).astype(o_ref.dtype)

    return kernel


# --------------------------------------------------------------------------- #
# Heuristics
# --------------------------------------------------------------------------- #
def _pick_tile(dim, candidates):
    """Largest candidate that divides `dim`; else the full dim (always legal
    w.r.t. the (8,128) block constraint since it equals the array extent)."""
    for c in candidates:
        if dim >= c and dim % c == 0:
            return c
    return dim


def _footprint(bb, tm, tn, tk, K, itemsize, x1_full_k, x1_bufs, x2_bufs):
    """Per-grid-step VMEM working set (bytes). Only the x1/x2 input blocks are
    multi-buffered; the output block is resident across the K axis (counted as
    double-buffered to stay conservative) and the f32 acc is single-buffered."""
    x1_elems = (K if x1_full_k else tk) * tm
    x2_elems = tn * tk
    return bb * (
        x1_bufs * itemsize * x1_elems
        + x2_bufs * itemsize * x2_elems
        + 2 * itemsize * tm * tn
        + 4 * tn * tm
    )


def _tpu_params():
    """Return (working-set budget bytes, vmem_limit_bytes or None, #TensorCores)."""
    budget, vmem_limit, num_tc = 12 << 20, None, 1
    kind = ""
    try:
        kind = str(jax.devices()[0].device_kind).lower()
    except Exception:
        pass
    if "v7" in kind:
        num_tc = 2  # v7x: 2 TensorCores per chip
    try:
        cap = int(pltpu.get_tpu_info().vmem_capacity_bytes)
        if "v7" in kind:
            cap = min(cap, 64 << 20)  # per-TensorCore VMEM on v7x
        if cap >= (8 << 20):
            budget = int(cap * 0.70)      # budget for our explicit buffers
            vmem_limit = int(cap * 0.85)  # scoped limit (headroom for compiler scratch)
    except Exception:
        pass  # fall back to the conservative defaults
    return budget, vmem_limit, num_tc


def _make_input_spec(block_shape, index_map, depth):
    if depth is None:
        return pl.BlockSpec(block_shape, index_map)
    try:
        return pl.BlockSpec(block_shape, index_map, pipeline_mode=pl.Buffered(depth))
    except Exception:  # pipeline_mode / Buffered unavailable -> default depth 2
        return pl.BlockSpec(block_shape, index_map)


# --------------------------------------------------------------------------- #
# Wrapper
# --------------------------------------------------------------------------- #
def permute_matmul(x1, x2):
    """out = matmul(transpose(x1, (0,2,1)), transpose(x2, (0,2,1)))."""
    B, K, M = x1.shape
    B2, N, K2 = x2.shape
    assert B == B2 and K == K2, "shape mismatch for batched permuted matmul"

    itemsize = jnp.dtype(x1.dtype).itemsize
    budget, vmem_limit, num_tc = _tpu_params()

    # ---- tile sizes --------------------------------------------------------
    tm = _pick_tile(M, (512, 256, 128))
    tn = _pick_tile(N, (512, 256, 128))
    # Largest K tile that divides K and keeps the bb=1 working set in budget
    # (bigger tk amortizes the f32 accumulator read-modify-write per FLOP).
    tk = None
    for c in (2048, 1024, 512, 256, 128):
        if K >= c and K % c == 0 and _footprint(1, tm, tn, c, K, itemsize, False, 2, 2) <= budget:
            tk = c
            break
    if tk is None:
        tk = _pick_tile(K, (512, 256, 128))

    # ---- batch blocking ----------------------------------------------------
    parallel_rest = (M // tm) * (N // tn)
    bb = 1
    valid = []
    for cand in (16, 8, 4, 2):
        if B % cand:
            continue
        if _footprint(cand, tm, tn, tk, K, itemsize, False, 2, 2) > budget:
            continue
        steps = parallel_rest * (B // cand)
        # Only enforce ">= num_tc parallel grid steps" on multi-TC chips (v7x).
        if num_tc > 1 and steps < num_tc <= parallel_rest * B:
            continue
        valid.append((cand, steps))
    if valid:
        if num_tc > 1:
            even = [c for c, s in valid if s % num_tc == 0]
            bb = even[0] if even else valid[0][0]
        else:
            bb = valid[0][0]

    n_i, n_j, n_k = M // tm, N // tn, K // tk

    # ---- full-K residency for x1 -------------------------------------------
    # With a tiled x1 block, the (b, k, i) tile is re-fetched from HBM for
    # every N tile j.  If the full-K slab fits VMEM, keep it resident across
    # the j and k axes and slice the K window inside the kernel.
    x1_full_k = (
        n_k > 1
        and n_j > 1
        and tk % 8 == 0
        and _footprint(bb, tm, tn, tk, K, itemsize, True, 2, 2) <= budget
    )

    # ---- deeper input buffering for tiny (latency-bound) tiles --------------
    x1_tile_bytes = bb * tk * tm * itemsize
    x2_tile_bytes = bb * tn * tk * itemsize
    total_steps = (B // bb) * n_i * n_j * n_k
    depth = None
    if (
        not x1_full_k
        and total_steps >= 3
        and max(x1_tile_bytes, x2_tile_bytes) < (256 << 10)
        and _footprint(bb, tm, tn, tk, K, itemsize, False, 3, 3) <= budget
    ):
        depth = 3

    # ---- output orientation --------------------------------------------------
    # If N is lane-sparse (< a multiple of 128 lanes) but M is lane-dense,
    # store the accumulator directly as (B, N, M) (unmasked vst, no in-kernel
    # transpose) and do the (0, 2, 1) permute in the wrapper.
    swap_out = (N % 128 != 0) and (M % 128 == 0)

    grid = (B // bb, n_i, n_j, n_k)

    if x1_full_k:
        x1_spec = pl.BlockSpec((bb, K, tm), lambda b, i, j, k: (b, 0, i))
    else:
        x1_spec = _make_input_spec((bb, tk, tm), lambda b, i, j, k: (b, k, i), depth)
    x2_spec = _make_input_spec((bb, tn, tk), lambda b, i, j, k: (b, j, k), depth)

    if swap_out:
        out_shape = jax.ShapeDtypeStruct((B, N, M), x1.dtype)
        out_spec = pl.BlockSpec((bb, tn, tm), lambda b, i, j, k: (b, j, i))
    else:
        out_shape = jax.ShapeDtypeStruct((B, M, N), x1.dtype)
        out_spec = pl.BlockSpec((bb, tm, tn), lambda b, i, j, k: (b, i, j))

    # Advisory cost estimate reflecting actual HBM traffic (incl. re-reads).
    x1_reads = 1 if (x1_full_k or n_k == 1) else n_j
    x2_reads = n_i
    cost = pl.CostEstimate(
        flops=2 * B * M * N * K,
        transcendentals=0,
        bytes_accessed=itemsize * (B * K * M * x1_reads + B * N * K * x2_reads + B * M * N),
    )

    cp_kwargs = dict(dimension_semantics=("parallel", "parallel", "parallel", "arbitrary"))
    if vmem_limit is not None:
        cp_kwargs["vmem_limit_bytes"] = vmem_limit

    out = pl.pallas_call(
        _make_kernel(x1_full_k, tk, swap_out),
        out_shape=out_shape,
        grid_spec=pltpu.PrefetchScalarGridSpec(
            num_scalar_prefetch=0,
            grid=grid,
            in_specs=[x1_spec, x2_spec],
            out_specs=out_spec,
            scratch_shapes=[pltpu.VMEM((bb, tn, tm), jnp.float32)],
        ),
        compiler_params=pltpu.CompilerParams(**cp_kwargs),
        cost_estimate=cost,
    )(x1, x2)

    if swap_out:
        out = jnp.transpose(out, (0, 2, 1))
    return out


if __name__ == "__main__":
    key = jax.random.PRNGKey(0)
    k1, k2, k3, k4, k5, k6, k7, k8 = jax.random.split(key, 8)

    def ref(a, b):
        return jnp.matmul(jnp.transpose(a, (0, 2, 1)), jnp.transpose(b, (0, 2, 1)))

    # 1) Small shape consistent with the module: x1 (B, K, M), x2 (B, N, K).
    B, K, M, N = 2, 16, 32, 64
    x1 = jax.random.normal(k1, (B, K, M), dtype=jnp.float32)
    x2 = jax.random.normal(k2, (B, N, K), dtype=jnp.float32)
    out = jax.block_until_ready(permute_matmul(x1, x2))
    assert out.shape == (B, M, N)
    assert jnp.allclose(out, ref(x1, x2), atol=1e-4, rtol=1e-4)

    # 2) Tiled multi-step accumulation path (large K block).
    y1 = jax.random.normal(k3, (2, 1024, 128), dtype=jnp.float32)
    y2 = jax.random.normal(k4, (2, 128, 1024), dtype=jnp.float32)
    out2 = jax.block_until_ready(permute_matmul(y1, y2))
    assert out2.shape == (2, 128, 128)
    assert jnp.allclose(out2, ref(y1, y2), atol=2e-3, rtol=2e-3)

    # 3) Full-K-resident x1 path (K//tk > 1 and N//tn > 1).
    z1 = jax.random.normal(k5, (1, 384, 128), dtype=jnp.float32)
    z2 = jax.random.normal(k6, (1, 384, 384), dtype=jnp.float32)
    out3 = jax.block_until_ready(permute_matmul(z1, z2))
    assert out3.shape == (1, 128, 384)
    assert jnp.allclose(out3, ref(z1, z2), atol=2e-3, rtol=2e-3)

    # 4) Lane-dense (swapped) output path: N < 128, M multiple of 128.
    w1 = jax.random.normal(k7, (2, 32, 128), dtype=jnp.float32)
    w2 = jax.random.normal(k8, (2, 64, 32), dtype=jnp.float32)
    out4 = jax.block_until_ready(permute_matmul(w1, w2))
    assert out4.shape == (2, 128, 64)
    assert jnp.allclose(out4, ref(w1, w2), atol=1e-4, rtol=1e-4)

    print("KERNEL_OK")
</pallas_src>

<mosaic_0001>
module attributes {stable_mosaic.version = 11 : i64} {
  func.func @kernel(%arg0: i32, %arg1: i32, %arg2: i32, %arg3: i32, %arg4: memref<2x16x32xf32, #tpu.memory_space<vmem>>, %arg5: memref<2x64x16xf32, #tpu.memory_space<vmem>>, %arg6: memref<2x32x64xf32, #tpu.memory_space<vmem>>, %arg7: memref<2x64x32xf32, #tpu.memory_space<vmem>>) attributes {dimension_semantics = [#tpu.dimension_semantics<parallel>, #tpu.dimension_semantics<parallel>, #tpu.dimension_semantics<parallel>, #tpu.dimension_semantics<arbitrary>], iteration_bounds = array<i64: 1, 1, 1, 1>, scalar_prefetch = 0 : i64, scratch_operands = 1 : i64, tpu.core_type = #tpu.core_type<tc>, window_params = [{transform_indices = @transform_0, window_bounds = array<i64: 2, 16, 32>}, {transform_indices = @transform_1, window_bounds = array<i64: 2, 64, 16>}, {transform_indices = @transform_2, window_bounds = array<i64: 2, 32, 64>}]} {
    %c0_i32 = arith.constant 0 : i32
    %0 = arith.cmpi eq, %arg3, %c0_i32 : i32
    %1 = arith.extui %0 : i1 to i32
    %c0_i32_0 = arith.constant 0 : i32
    %2 = arith.cmpi ne, %1, %c0_i32_0 : i32
    scf.if %2 {
      %cst_14 = arith.constant 0.000000e+00 : f32
      %12 = vector.broadcast %cst_14 : f32 to vector<2x64x32xf32>
      %c0_15 = arith.constant 0 : index
      %c0_16 = arith.constant 0 : index
      %c0_17 = arith.constant 0 : index
      %13 = vector.load %arg7[%c0_15, %c0_16, %c0_17] : memref<2x64x32xf32, #tpu.memory_space<vmem>>, vector<2x64x32xf32>
      tpu.vector_store %arg7[%c0_15, %c0_16, %c0_17], %12 {strides = array<i32>} : memref<2x64x32xf32, #tpu.memory_space<vmem>>, vector<2x64x32xf32>,
    } else {
    }
    %c0 = arith.constant 0 : index
    %c0_1 = arith.constant 0 : index
    %c0_2 = arith.constant 0 : index
    %3 = vector.load %arg4[%c0, %c0_1, %c0_2] : memref<2x16x32xf32, #tpu.memory_space<vmem>>, vector<2x16x32xf32>
    %c0_3 = arith.constant 0 : index
    %c0_4 = arith.constant 0 : index
    %c0_5 = arith.constant 0 : index
    %4 = vector.load %arg7[%c0_3, %c0_4, %c0_5] : memref<2x64x32xf32, #tpu.memory_space<vmem>>, vector<2x64x32xf32>
    %c0_6 = arith.constant 0 : index
    %c0_7 = arith.constant 0 : index
    %c0_8 = arith.constant 0 : index
    %5 = vector.load %arg5[%c0_6, %c0_7, %c0_8] : memref<2x64x16xf32, #tpu.memory_space<vmem>>, vector<2x64x16xf32>
    %cst = arith.constant dense<0.000000e+00> : vector<2x64x32xf32>
    %6 = tpu.matmul %5, %3, %cst {dimension_numbers = #tpu.dot_dimension_numbers<[2], [1], [1], [2], [0, 0, 0, 1, 1, 2], [0], [0]>} : vector<2x64x16xf32>, vector<2x16x32xf32>, vector<2x64x32xf32> -> vector<2x64x32xf32>
    %7 = arith.addf %4, %6 : vector<2x64x32xf32>
    %c0_9 = arith.constant 0 : index
    %c0_10 = arith.constant 0 : index
    %c0_11 = arith.constant 0 : index
    %8 = vector.load %arg7[%c0_9, %c0_10, %c0_11] : memref<2x64x32xf32, #tpu.memory_space<vmem>>, vector<2x64x32xf32>
    tpu.vector_store %arg7[%c0_9, %c0_10, %c0_11], %7 {strides = array<i32>} : memref<2x64x32xf32, #tpu.memory_space<vmem>>, vector<2x64x32xf32>,
    %c0_i32_12 = arith.constant 0 : i32
    %9 = arith.cmpi eq, %arg3, %c0_i32_12 : i32
    %10 = arith.extui %9 : i1 to i32
    %c0_i32_13 = arith.constant 0 : i32
    %11 = arith.cmpi ne, %10, %c0_i32_13 : i32
    scf.if %11 {
      %c0_14 = arith.constant 0 : index
      %c0_15 = arith.constant 0 : index
      %c0_16 = arith.constant 0 : index
      %12 = vector.load %arg7[%c0_14, %c0_15, %c0_16] : memref<2x64x32xf32, #tpu.memory_space<vmem>>, vector<2x64x32xf32>
      %13 = tpu.transpose %12, [0, 2, 1] : vector<2x64x32xf32> -> vector<2x32x64xf32>
      %c0_17 = arith.constant 0 : index
      %c0_18 = arith.constant 0 : index
      %c0_19 = arith.constant 0 : index
      %14 = vector.load %arg6[%c0_17, %c0_18, %c0_19] : memref<2x32x64xf32, #tpu.memory_space<vmem>>, vector<2x32x64xf32>
      tpu.vector_store %arg6[%c0_17, %c0_18, %c0_19], %13 {strides = array<i32>} : memref<2x32x64xf32, #tpu.memory_space<vmem>>, vector<2x32x64xf32>,
    } else {
    }
    return
  }
  func.func @transform_0(%arg0: i32, %arg1: i32, %arg2: i32, %arg3: i32) -> (i32, i32, i32) {
    %c0_i32 = arith.constant 0 : i32
    return %arg0, %arg3, %arg1 : i32, i32, i32
  }
  func.func @transform_1(%arg0: i32, %arg1: i32, %arg2: i32, %arg3: i32) -> (i32, i32, i32) {
    %c0_i32 = arith.constant 0 : i32
    return %arg0, %arg2, %arg3 : i32, i32, i32
  }
  func.func @transform_2(%arg0: i32, %arg1: i32, %arg2: i32, %arg3: i32) -> (i32, i32, i32) {
    %c0_i32 = arith.constant 0 : i32
    return %arg0, %arg1, %arg2 : i32, i32, i32
  }
}

</mosaic_0001>

<llo_original>
// kernel: tpu_custom_call.1
$region0: #{tpu_custom_call.1}
  #allocation0 [shape = 'u32[]', space=smem, size = 0x4, offset = 0x4, fixed_abs, tag = 'smem constant byte address 0x4 - core index']
  #allocation1 [shape = 'u32[144,128]{1,0:T(1,128)}', space=vmem, size = 0x12000, scoped, tag = 'internal scratch']
  #allocation2 [shape = 'f32[2,64,32]{2,1,0:T(8,128)}', space=vmem, size = 0x10000, scoped, tag = 'scratch operand']
  %s0 = inlined_call_operand.vmem [shape: f32[2,16,32], index: 0, kind: input, shape index: {}]
  %s1 = inlined_call_operand.vmem [shape: f32[2,64,16], index: 1, kind: input, shape index: {}]
  %s2 = inlined_call_operand.hbm [shape: f32[2,32,64], index: 2, kind: output, shape index: {}]
  %s3 = sld [smem:[#allocation0]]
  $region26: #{tpu_custom_call.1} parent=0
    _
  %s5 = ssub.s32 1, %s3
  %s6 = scalar_select 0, %s5, %s3
  $region1: #{tpu_custom_call.1} parent=0
    #allocation3 [shape = 'u8[32768]{0}', space=vmem, size = 0x8000, scoped, tag = 'output window, operand 0, single buffered']
    #allocation4 [shape = 's32[1]{0}', space=sflag, size = 0x4, scoped, tag = 'scoped memory for tpu_custom_call.1']
    %7 = vsyncpa [#allocation4], 0
    // Predicated region
    $region2: #{tpu_custom_call.1} parent=1 // pred_check
      _
    $region3: #{tpu_custom_call.1} parent=1 // pred_check_branch
      %9 = sbr.rel (0) target = $region5
    $region4: #{tpu_custom_call.1} parent=1 // pred_region
      _
    $region5: #{tpu_custom_call.1} parent=1 // pred_fallthru
      _
    // Predicated region
    $region6: #{tpu_custom_call.1} parent=1 // pred_check
      _
    $region7: #{tpu_custom_call.1} parent=1 // pred_check_branch
      %11 = sbr.rel (0) target = $region9
    $region8: #{tpu_custom_call.1} parent=1 // pred_region
      _
    $region9: #{tpu_custom_call.1} parent=1 // pred_fallthru
      _
    %p12 = scmp.eq.s32.totalorder 0, 0
    // Predicated region
    $region10: #{tpu_custom_call.1} parent=1 // pred_check
      %p13 = pneg %p12
    $region11: #{tpu_custom_call.1} parent=1 // pred_check_branch
      %15 = sbr.rel (%p13) target = $region13
    $region12: #{tpu_custom_call.1} parent=1 // pred_region
      %vm16 = vcmask 261120
      %17 = vst.msk [vmem:[#allocation2] sm:$0xff] %vm16, 0.0
      %18 = vst.msk [vmem:[#allocation2 + $0x8] sm:$0xff] %vm16, 0.0
      %19 = vst.msk [vmem:[#allocation2 + $0x10] sm:$0xff] %vm16, 0.0
      %20 = vst.msk [vmem:[#allocation2 + $0x18] sm:$0xff] %vm16, 0.0
      %21 = vst.msk [vmem:[#allocation2 + $0x20] sm:$0xff] %vm16, 0.0
      %22 = vst.msk [vmem:[#allocation2 + $0x28] sm:$0xff] %vm16, 0.0
      %23 = vst.msk [vmem:[#allocation2 + $0x30] sm:$0xff] %vm16, 0.0
      %24 = vst.msk [vmem:[#allocation2 + $0x38] sm:$0xff] %vm16, 0.0
      %25 = vst.msk [vmem:[#allocation2 + $0x40] sm:$0xff] %vm16, 0.0
      %26 = vst.msk [vmem:[#allocation2 + $0x48] sm:$0xff] %vm16, 0.0
      %27 = vst.msk [vmem:[#allocation2 + $0x50] sm:$0xff] %vm16, 0.0
      %28 = vst.msk [vmem:[#allocation2 + $0x58] sm:$0xff] %vm16, 0.0
      %29 = vst.msk [vmem:[#allocation2 + $0x60] sm:$0xff] %vm16, 0.0
      %30 = vst.msk [vmem:[#allocation2 + $0x68] sm:$0xff] %vm16, 0.0
      %31 = vst.msk [vmem:[#allocation2 + $0x70] sm:$0xff] %vm16, 0.0
      %32 = vst.msk [vmem:[#allocation2 + $0x78] sm:$0xff] %vm16, 0.0
    $region13: #{tpu_custom_call.1} parent=1 // pred_fallthru
      _
    %v33 = vld [vmem:[%s0] sm:$0xff]
    %v34 = vld [vmem:[%s0 + $0x8] sm:$0xff]
    %v35 = vld [vmem:[%s0 + $0x10] sm:$0xff]
    %v36 = vld [vmem:[%s0 + $0x18] sm:$0xff]
    %v37 = vld [vmem:[#allocation2] sm:$0xff]
    %v38 = vld [vmem:[#allocation2 + $0x8] sm:$0xff]
    %v39 = vld [vmem:[#allocation2 + $0x10] sm:$0xff]
    %v40 = vld [vmem:[#allocation2 + $0x18] sm:$0xff]
    %v41 = vld [vmem:[#allocation2 + $0x20] sm:$0xff]
    %v42 = vld [vmem:[#allocation2 + $0x28] sm:$0xff]
    %v43 = vld [vmem:[#allocation2 + $0x30] sm:$0xff]
    %v44 = vld [vmem:[#allocation2 + $0x38] sm:$0xff]
    %v45 = vld [vmem:[#allocation2 + $0x40] sm:$0xff]
    %v46 = vld [vmem:[#allocation2 + $0x48] sm:$0xff]
    %v47 = vld [vmem:[#allocation2 + $0x50] sm:$0xff]
    %v48 = vld [vmem:[#allocation2 + $0x58] sm:$0xff]
    %v49 = vld [vmem:[#allocation2 + $0x60] sm:$0xff]
    %v50 = vld [vmem:[#allocation2 + $0x68] sm:$0xff]
    %v51 = vld [vmem:[#allocation2 + $0x70] sm:$0xff]
    %v52 = vld [vmem:[#allocation2 + $0x78] sm:$0xff]
    %v53 = vld [vmem:[%s1] sm:$0xff]
    %v54 = vld [vmem:[%s1 + $0x8] sm:$0xff]
    %v55 = vld [vmem:[%s1 + $0x10] sm:$0xff]
    %v56 = vld [vmem:[%s1 + $0x18] sm:$0xff]
    %v57 = vld [vmem:[%s1 + $0x20] sm:$0xff]
    %v58 = vld [vmem:[%s1 + $0x28] sm:$0xff]
    %v59 = vld [vmem:[%s1 + $0x30] sm:$0xff]
    %v60 = vld [vmem:[%s1 + $0x38] sm:$0xff]
    %v61 = vld [vmem:[%s1 + $0x40] sm:$0xff]
    %v62 = vld [vmem:[%s1 + $0x48] sm:$0xff]
    %v63 = vld [vmem:[%s1 + $0x50] sm:$0xff]
    %v64 = vld [vmem:[%s1 + $0x58] sm:$0xff]
    %v65 = vld [vmem:[%s1 + $0x60] sm:$0xff]
    %v66 = vld [vmem:[%s1 + $0x68] sm:$0xff]
    %v67 = vld [vmem:[%s1 + $0x70] sm:$0xff]
    %v68 = vld [vmem:[%s1 + $0x78] sm:$0xff]
    %vm69 = vcmask 130048
    %v71 = vsel %vm69, %v53, 0
    %v74 = vsel %vm69, %v54, 0
    %v77 = vsel %vm69, %v55, 0
    %v80 = vsel %vm69, %v56, 0
    %v83 = vsel %vm69, %v57, 0
    %v86 = vsel %vm69, %v58, 0
    %v89 = vsel %vm69, %v59, 0
    %v92 = vsel %vm69, %v60, 0
    %94 = vmatprep.subr.mxu0 0.0
    %95 = vmatpush1.msra.mxu0 0.0
    %96 = vmatprep.subr.mxu0 0.0
    %97 = vmatpush1.msra.mxu0 0.0
    %98 = vmatprep.subr.mxu0 0.0
    %99 = vmatpush1.msra.mxu0 0.0
    %100 = vmatprep.subr.mxu0 0.0
    %101 = vmatpush1.msra.mxu0 0.0
    %102 = vmatprep.subr.mxu0 0.0
    %103 = vmatpush1.msra.mxu0 0.0
    %104 = vmatprep.subr.mxu0 0.0
    %105 = vmatpush1.msra.mxu0 0.0
    %106 = vmatprep.subr.mxu0 0.0
    %107 = vmatpush1.msra.mxu0 0.0
    %108 = vmatprep.subr.mxu0 0.0
    %109 = vmatpush1.msra.mxu0 0.0
    %110 = vmatprep.subr.mxu0 0.0
    %111 = vmatpush1.msra.mxu0 0.0
    %112 = vmatprep.subr.mxu0 0.0
    %113 = vmatpush1.msra.mxu0 0.0
    %114 = vmatprep.subr.mxu0 0.0
    %115 = vmatpush1.msra.mxu0 0.0
    %116 = vmatprep.subr.mxu0 0.0
    %117 = vmatpush1.msra.mxu0 0.0
    %118 = vmatprep.subr.mxu0 0.0
    %119 = vmatpush1.msra.mxu0 0.0
    %120 = vmatprep.subr.mxu0 0.0
    %121 = vmatpush1.msra.mxu0 0.0
    %122 = vmatprep.subr.mxu0 0.0
    %123 = vmatpush1.msra.mxu0 %v34
    %124 = vmatprep.subr.mxu0 0.0
    %125 = vmatpush1.msra.mxu0 %v33
    %126 = vmatprep.subr.mxu0 0.0
    %127 = vmatpush2.msra.mxu0 0.0
    %128 = vmatprep.subr.mxu0 0.0
    %129 = vmatpush2.msra.mxu0 0.0
    %130 = vmatprep.subr.mxu0 0.0
    %131 = vmatpush2.msra.mxu0 0.0
    %132 = vmatprep.subr.mxu0 0.0
    %133 = vmatpush2.msra.mxu0 0.0
    %134 = vmatprep.subr.mxu0 0.0
    %135 = vmatpush2.msra.mxu0 0.0
    %136 = vmatprep.subr.mxu0 0.0
    %137 = vmatpush2.msra.mxu0 0.0
    %138 = vmatprep.subr.mxu0 0.0
    %139 = vmatpush2.msra.mxu0 0.0
    %140 = vmatprep.subr.mxu0 0.0
    %141 = vmatpush2.msra.mxu0 0.0
    %142 = vmatprep.subr.mxu0 0.0
    %143 = vmatpush2.msra.mxu0 0.0
    %144 = vmatprep.subr.mxu0 0.0
    %145 = vmatpush2.msra.mxu0 0.0
    %146 = vmatprep.subr.mxu0 0.0
    %147 = vmatpush2.msra.mxu0 0.0
    %148 = vmatprep.subr.mxu0 0.0
    %149 = vmatpush2.msra.mxu0 0.0
    %150 = vmatprep.subr.mxu0 0.0
    %151 = vmatpush2.msra.mxu0 0.0
    %152 = vmatprep.subr.mxu0 0.0
    %153 = vmatpush2.msra.mxu0 0.0
    %154 = vmatprep.subr.mxu0 0.0
    %155 = vmatpush2.msra.mxu0 0.0
    %156 = vmatprep.subr.mxu0 0.0
    %157 = vmatpush2.msra.mxu0 0.0
    %158 = vmatprep.mubr.f32.mxu0 0.0
    %159 = vmatmul.mubr.f32.gmra.mxu0 %v71
    %v160 = vpop.f32.mrf.mxu0
    %v161 = vadd.f32 0.0, %v160
    %v162 = vpop.f32.mrf.mxu0
    %163 = vmatprep.mubr.f32.mxu0 0.0
    %164 = vmatmul.mubr.f32.gmra.mxu0 %v74
    %v165 = vpop.f32.mrf.mxu0
    %v166 = vadd.f32 0.0, %v165
    %v167 = vpop.f32.mrf.mxu0
    %168 = vmatprep.mubr.f32.mxu0 0.0
    %169 = vmatmul.mubr.f32.gmra.mxu0 %v77
    %v170 = vpop.f32.mrf.mxu0
    %v171 = vadd.f32 0.0, %v170
    %v172 = vpop.f32.mrf.mxu0
    %173 = vmatprep.mubr.f32.mxu0 0.0
    %174 = vmatmul.mubr.f32.gmra.mxu0 %v80
    %v175 = vpop.f32.mrf.mxu0
    %v176 = vadd.f32 0.0, %v175
    %v177 = vpop.f32.mrf.mxu0
    %178 = vmatprep.mubr.f32.mxu0 0.0
    %179 = vmatmul.mubr.f32.gmra.mxu0 %v83
    %v180 = vpop.f32.mrf.mxu0
    %v181 = vadd.f32 0.0, %v180
    %v182 = vpop.f32.mrf.mxu0
    %183 = vmatprep.mubr.f32.mxu0 0.0
    %184 = vmatmul.mubr.f32.gmra.mxu0 %v86
    %v185 = vpop.f32.mrf.mxu0
    %v186 = vadd.f32 0.0, %v185
    %v187 = vpop.f32.mrf.mxu0
    %188 = vmatprep.mubr.f32.mxu0 0.0
    %189 = vmatmul.mubr.f32.gmra.mxu0 %v89
    %v190 = vpop.f32.mrf.mxu0
    %v191 = vadd.f32 0.0, %v190
    %v192 = vpop.f32.mrf.mxu0
    %193 = vmatprep.mubr.f32.mxu0 0.0
    %194 = vmatmul.mubr.f32.gmra.mxu0 %v92
    %v195 = vpop.f32.mrf.mxu0
    %v196 = vadd.f32 0.0, %v195
    %v197 = vpop.f32.mrf.mxu0
    %198 = vdwg.mxu0
    %v200 = vsel %vm69, %v61, 0
    %v203 = vsel %vm69, %v62, 0
    %v206 = vsel %vm69, %v63, 0
    %v209 = vsel %vm69, %v64, 0
    %v212 = vsel %vm69, %v65, 0
    %v215 = vsel %vm69, %v66, 0
    %v218 = vsel %vm69, %v67, 0
    %v221 = vsel %vm69, %v68, 0
    %223 = vmatprep.subr.mxu0 0.0
    %224 = vmatpush1.msra.mxu0 0.0
    %225 = vmatprep.subr.mxu0 0.0
    %226 = vmatpush1.msra.mxu0 0.0
    %227 = vmatprep.subr.mxu0 0.0
    %228 = vmatpush1.msra.mxu0 0.0
    %229 = vmatprep.subr.mxu0 0.0
    %230 = vmatpush1.msra.mxu0 0.0
    %231 = vmatprep.subr.mxu0 0.0
    %232 = vmatpush1.msra.mxu0 0.0
    %233 = vmatprep.subr.mxu0 0.0
    %234 = vmatpush1.msra.mxu0 0.0
    %235 = vmatprep.subr.mxu0 0.0
    %236 = vmatpush1.msra.mxu0 0.0
    %237 = vmatprep.subr.mxu0 0.0
    %238 = vmatpush1.msra.mxu0 0.0
    %239 = vmatprep.subr.mxu0 0.0
    %240 = vmatpush1.msra.mxu0 0.0
    %241 = vmatprep.subr.mxu0 0.0
    %242 = vmatpush1.msra.mxu0 0.0
    %243 = vmatprep.subr.mxu0 0.0
    %244 = vmatpush1.msra.mxu0 0.0
    %245 = vmatprep.subr.mxu0 0.0
    %246 = vmatpush1.msra.mxu0 0.0
    %247 = vmatprep.subr.mxu0 0.0
    %248 = vmatpush1.msra.mxu0 0.0
    %249 = vmatprep.subr.mxu0 0.0
    %250 = vmatpush1.msra.mxu0 0.0
    %251 = vmatprep.subr.mxu0 0.0
    %252 = vmatpush1.msra.mxu0 %v36
    %253 = vmatprep.subr.mxu0 0.0
    %254 = vmatpush1.msra.mxu0 %v35
    %255 = vmatprep.subr.mxu0 0.0
    %256 = vmatpush2.msra.mxu0 0.0
    %257 = vmatprep.subr.mxu0 0.0
    %258 = vmatpush2.msra.mxu0 0.0
    %259 = vmatprep.subr.mxu0 0.0
    %260 = vmatpush2.msra.mxu0 0.0
    %261 = vmatprep.subr.mxu0 0.0
    %262 = vmatpush2.msra.mxu0 0.0
    %263 = vmatprep.subr.mxu0 0.0
    %264 = vmatpush2.msra.mxu0 0.0
    %265 = vmatprep.subr.mxu0 0.0
    %266 = vmatpush2.msra.mxu0 0.0
    %267 = vmatprep.subr.mxu0 0.0
    %268 = vmatpush2.msra.mxu0 0.0
    %269 = vmatprep.subr.mxu0 0.0
    %270 = vmatpush2.msra.mxu0 0.0
    %271 = vmatprep.subr.mxu0 0.0
    %272 = vmatpush2.msra.mxu0 0.0
    %273 = vmatprep.subr.mxu0 0.0
    %274 = vmatpush2.msra.mxu0 0.0
    %275 = vmatprep.subr.mxu0 0.0
    %276 = vmatpush2.msra.mxu0 0.0
    %277 = vmatprep.subr.mxu0 0.0
    %278 = vmatpush2.msra.mxu0 0.0
    %279 = vmatprep.subr.mxu0 0.0
    %280 = vmatpush2.msra.mxu0 0.0
    %281 = vmatprep.subr.mxu0 0.0
    %282 = vmatpush2.msra.mxu0 0.0
    %283 = vmatprep.subr.mxu0 0.0
    %284 = vmatpush2.msra.mxu0 0.0
    %285 = vmatprep.subr.mxu0 0.0
    %286 = vmatpush2.msra.mxu0 0.0
    %287 = vmatprep.mubr.f32.mxu0 0.0
    %288 = vmatmul.mubr.f32.gmra.mxu0 %v200
    %v289 = vpop.f32.mrf.mxu0
    %v290 = vadd.f32 0.0, %v289
    %v291 = vpop.f32.mrf.mxu0
    %292 = vmatprep.mubr.f32.mxu0 0.0
    %293 = vmatmul.mubr.f32.gmra.mxu0 %v203
    %v294 = vpop.f32.mrf.mxu0
    %v295 = vadd.f32 0.0, %v294
    %v296 = vpop.f32.mrf.mxu0
    %297 = vmatprep.mubr.f32.mxu0 0.0
    %298 = vmatmul.mubr.f32.gmra.mxu0 %v206
    %v299 = vpop.f32.mrf.mxu0
    %v300 = vadd.f32 0.0, %v299
    %v301 = vpop.f32.mrf.mxu0
    %302 = vmatprep.mubr.f32.mxu0 0.0
    %303 = vmatmul.mubr.f32.gmra.mxu0 %v209
    %v304 = vpop.f32.mrf.mxu0
    %v305 = vadd.f32 0.0, %v304
    %v306 = vpop.f32.mrf.mxu0
    %307 = vmatprep.mubr.f32.mxu0 0.0
    %308 = vmatmul.mubr.f32.gmra.mxu0 %v212
    %v309 = vpop.f32.mrf.mxu0
    %v310 = vadd.f32 0.0, %v309
    %v311 = vpop.f32.mrf.mxu0
    %312 = vmatprep.mubr.f32.mxu0 0.0
    %313 = vmatmul.mubr.f32.gmra.mxu0 %v215
    %v314 = vpop.f32.mrf.mxu0
    %v315 = vadd.f32 0.0, %v314
    %v316 = vpop.f32.mrf.mxu0
    %317 = vmatprep.mubr.f32.mxu0 0.0
    %318 = vmatmul.mubr.f32.gmra.mxu0 %v218
    %v319 = vpop.f32.mrf.mxu0
    %v320 = vadd.f32 0.0, %v319
    %v321 = vpop.f32.mrf.mxu0
    %322 = vmatprep.mubr.f32.mxu0 0.0
    %323 = vmatmul.mubr.f32.gmra.mxu0 %v221
    %v324 = vpop.f32.mrf.mxu0
    %v325 = vadd.f32 0.0, %v324
    %v326 = vpop.f32.mrf.mxu0
    %327 = vdwg.mxu0
    %v328 = vadd.f32 %v37, %v161
    %v329 = vadd.f32 %v38, %v166
    %v330 = vadd.f32 %v39, %v171
    %v331 = vadd.f32 %v40, %v176
    %v332 = vadd.f32 %v41, %v181
    %v333 = vadd.f32 %v42, %v186
    %v334 = vadd.f32 %v43, %v191
    %v335 = vadd.f32 %v44, %v196
    %v336 = vadd.f32 %v45, %v290
    %v337 = vadd.f32 %v46, %v295
    %v338 = vadd.f32 %v47, %v300
    %v339 = vadd.f32 %v48, %v305
    %v340 = vadd.f32 %v49, %v310
    %v341 = vadd.f32 %v50, %v315
    %v342 = vadd.f32 %v51, %v320
    %v343 = vadd.f32 %v52, %v325
    %vm344 = vcmask 261120
    %345 = vst.msk [vmem:[#allocation2] sm:$0xff] %vm344, %v328
    %346 = vst.msk [vmem:[#allocation2 + $0x8] sm:$0xff] %vm344, %v329
    %347 = vst.msk [vmem:[#allocation2 + $0x10] sm:$0xff] %vm344, %v330
    %348 = vst.msk [vmem:[#allocation2 + $0x18] sm:$0xff] %vm344, %v331
    %349 = vst.msk [vmem:[#allocation2 + $0x20] sm:$0xff] %vm344, %v332
    %350 = vst.msk [vmem:[#allocation2 + $0x28] sm:$0xff] %vm344, %v333
    %351 = vst.msk [vmem:[#allocation2 + $0x30] sm:$0xff] %vm344, %v334
    %352 = vst.msk [vmem:[#allocation2 + $0x38] sm:$0xff] %vm344, %v335
    %353 = vst.msk [vmem:[#allocation2 + $0x40] sm:$0xff] %vm344, %v336
    %354 = vst.msk [vmem:[#allocation2 + $0x48] sm:$0xff] %vm344, %v337
    %355 = vst.msk [vmem:[#allocation2 + $0x50] sm:$0xff] %vm344, %v338
    %356 = vst.msk [vmem:[#allocation2 + $0x58] sm:$0xff] %vm344, %v339
    %357 = vst.msk [vmem:[#allocation2 + $0x60] sm:$0xff] %vm344, %v340
    %358 = vst.msk [vmem:[#allocation2 + $0x68] sm:$0xff] %vm344, %v341
    %359 = vst.msk [vmem:[#allocation2 + $0x70] sm:$0xff] %vm344, %v342
    %360 = vst.msk [vmem:[#allocation2 + $0x78] sm:$0xff] %vm344, %v343
    // Predicated region
    $region14: #{tpu_custom_call.1} parent=1 // pred_check
      %p361 = pneg %p12
    $region15: #{tpu_custom_call.1} parent=1 // pred_check_branch
      %363 = sbr.rel (%p361) target = $region17
    $region16: #{tpu_custom_call.1} parent=1 // pred_region
      %v364 = vld [vmem:[#allocation2] sm:$0xff]
      %v365 = vld [vmem:[#allocation2 + $0x8] sm:$0xff]
      %v366 = vld [vmem:[#allocation2 + $0x10] sm:$0xff]
      %v367 = vld [vmem:[#allocation2 + $0x18] sm:$0xff]
      %v368 = vld [vmem:[#allocation2 + $0x20] sm:$0xff]
      %v369 = vld [vmem:[#allocation2 + $0x28] sm:$0xff]
      %v370 = vld [vmem:[#allocation2 + $0x30] sm:$0xff]
      %v371 = vld [vmem:[#allocation2 + $0x38] sm:$0xff]
      %v372 = vld [vmem:[#allocation2 + $0x40] sm:$0xff]
      %v373 = vld [vmem:[#allocation2 + $0x48] sm:$0xff]
      %v374 = vld [vmem:[#allocation2 + $0x50] sm:$0xff]
      %v375 = vld [vmem:[#allocation2 + $0x58] sm:$0xff]
      %v376 = vld [vmem:[#allocation2 + $0x60] sm:$0xff]
      %v377 = vld [vmem:[#allocation2 + $0x68] sm:$0xff]
      %v378 = vld [vmem:[#allocation2 + $0x70] sm:$0xff]
      %v379 = vld [vmem:[#allocation2 + $0x78] sm:$0xff]
      %380 = vxpose.xlu0.b32.start [1/16] %v364, 128
      %381 = vxpose.xlu0.b32.cont [2/16] %v365, 128
      %382 = vxpose.xlu0.b32.cont [3/16] %v366, 128
      %383 = vxpose.xlu0.b32.cont [4/16] %v367, 128
      %384 = vxpose.xlu0.b32.cont [5/16] %v368, 128
      %385 = vxpose.xlu0.b32.cont [6/16] %v369, 128
      %386 = vxpose.xlu0.b32.cont [7/16] %v370, 128
      %387 = vxpose.xlu0.b32.cont [8/16] %v371, 128
      %388 = vxpose.xlu0.b32.cont [9/16] 0.0, 128
      %389 = vxpose.xlu0.b32.cont [10/16] 0.0, 128
      %390 = vxpose.xlu0.b32.cont [11/16] 0.0, 128
      %391 = vxpose.xlu0.b32.cont [12/16] 0.0, 128
      %392 = vxpose.xlu0.b32.cont [13/16] 0.0, 128
      %393 = vxpose.xlu0.b32.cont [14/16] 0.0, 128
      %394 = vxpose.xlu0.b32.cont [15/16] 0.0, 128
      %395 = vxpose.xlu0.b32.end [16/16] 0.0, 128
      %v396 = vpop.trf.xlu0
      %v397 = vpop.trf.xlu0
      %v398 = vpop.trf.xlu0
      %v399 = vpop.trf.xlu0
      %v400 = vpop.trf.xlu0
      %v401 = vpop.trf.xlu0
      %v402 = vpop.trf.xlu0
      %v403 = vpop.trf.xlu0
      %v404 = vpop.trf.xlu0
      %v405 = vpop.trf.xlu0
      %v406 = vpop.trf.xlu0
      %v407 = vpop.trf.xlu0
      %v408 = vpop.trf.xlu0
      %v409 = vpop.trf.xlu0
      %v410 = vpop.trf.xlu0
      %v411 = vpop.trf.xlu0
      %412 = vxpose.xlu0.b32.start [1/16] %v372, 128
      %413 = vxpose.xlu0.b32.cont [2/16] %v373, 128
      %414 = vxpose.xlu0.b32.cont [3/16] %v374, 128
      %415 = vxpose.xlu0.b32.cont [4/16] %v375, 128
      %416 = vxpose.xlu0.b32.cont [5/16] %v376, 128
      %417 = vxpose.xlu0.b32.cont [6/16] %v377, 128
      %418 = vxpose.xlu0.b32.cont [7/16] %v378, 128
      %419 = vxpose.xlu0.b32.cont [8/16] %v379, 128
      %420 = vxpose.xlu0.b32.cont [9/16] 0.0, 128
      %421 = vxpose.xlu0.b32.cont [10/16] 0.0, 128
      %422 = vxpose.xlu0.b32.cont [11/16] 0.0, 128
      %423 = vxpose.xlu0.b32.cont [12/16] 0.0, 128
      %424 = vxpose.xlu0.b32.cont [13/16] 0.0, 128
      %425 = vxpose.xlu0.b32.cont [14/16] 0.0, 128
      %426 = vxpose.xlu0.b32.cont [15/16] 0.0, 128
      %427 = vxpose.xlu0.b32.end [16/16] 0.0, 128
      %v428 = vpop.trf.xlu0
      %v429 = vpop.trf.xlu0
      %v430 = vpop.trf.xlu0
      %v431 = vpop.trf.xlu0
      %v432 = vpop.trf.xlu0
      %v433 = vpop.trf.xlu0
      %v434 = vpop.trf.xlu0
      %v435 = vpop.trf.xlu0
      %v436 = vpop.trf.xlu0
      %v437 = vpop.trf.xlu0
      %v438 = vpop.trf.xlu0
      %v439 = vpop.trf.xlu0
      %v440 = vpop.trf.xlu0
      %v441 = vpop.trf.xlu0
      %v442 = vpop.trf.xlu0
      %v443 = vpop.trf.xlu0
      %vm444 = vcmask 523264
      %445 = vst.msk [vmem:[#allocation3] sm:$0xff] %vm444, %v396
      %446 = vst.msk [vmem:[#allocation3 + $0x8] sm:$0xff] %vm444, %v397
      %447 = vst.msk [vmem:[#allocation3 + $0x10] sm:$0xff] %vm444, %v398
      %448 = vst.msk [vmem:[#allocation3 + $0x18] sm:$0xff] %vm444, %v399
      %449 = vst.msk [vmem:[#allocation3 + $0x20] sm:$0xff] %vm444, %v428
      %450 = vst.msk [vmem:[#allocation3 + $0x28] sm:$0xff] %vm444, %v429
      %451 = vst.msk [vmem:[#allocation3 + $0x30] sm:$0xff] %vm444, %v430
      %452 = vst.msk [vmem:[#allocation3 + $0x38] sm:$0xff] %vm444, %v431
    $region17: #{tpu_custom_call.1} parent=1 // pred_fallthru
      _
    // Predicated region
    $region18: #{tpu_custom_call.1} parent=1 // pred_check
      _
    $region19: #{tpu_custom_call.1} parent=1 // pred_check_branch
      %454 = sbr.rel (0) target = $region21
    $region20: #{tpu_custom_call.1} parent=1 // pred_region
      %s456 = ssub.s32 1024, 1024
      %457 = vsyncadd [#allocation4], %s456
      %s458 = sshll.u32 [#allocation3], 4
      %s459 = int_to_ptr.vmem [resolvable:$true] %s458
      %464 = dma.vmem_to_hbm [thread:$0]  %s459, 1024, %s2, [#allocation4], 128, 128, 8
    $region21: #{tpu_custom_call.1} parent=1 // pred_fallthru
      _
    // Predicated region
    $region22: #{tpu_custom_call.1} parent=1 // pred_check
      _
    $region23: #{tpu_custom_call.1} parent=1 // pred_check_branch
      %466 = sbr.rel (0) target = $region25
    $region24: #{tpu_custom_call.1} parent=1 // pred_region
      %467 = dma.done [#allocation4], 1024
    $region25: #{tpu_custom_call.1} parent=1 // pred_fallthru
      _
    %468 = vsyncpa [#allocation4], 1

</llo_original>
